<compile_context>
chip_gen: v7x
topology: tpu7x:2x2x1
jax: 0.10.0
libtpu: 0.0.40
codegen_flags: <defaults>
</compile_context>

<pallas_src>
import functools

import jax
import jax.numpy as jnp
from jax.experimental import pallas as pl
from jax.experimental.pallas import tpu as pltpu

LANES = 128
MAX_TILE_ROWS = 2048  # 2048 * 128 * 4B = 1 MiB per input block


def _stable_mse_kernel(x_ref, t_ref, o_ref, acc_ref, *,
                       rows_total, tile_rows, tiles_per_split, ragged):
    c = pl.program_id(0)  # split axis ("parallel", shards across TCs on v7x)
    i = pl.program_id(1)  # tile axis ("arbitrary" reduction)

    @pl.when(i == 0)
    def _init():
        acc_ref[...] = jnp.zeros_like(acc_ref)

    d = x_ref[...].astype(jnp.float32) - t_ref[...].astype(jnp.float32)
    dd = d * d

    if ragged:
        # Static Python bool: only traced when the last block extends past the
        # array.  Mask out-of-bounds (garbage) rows; jnp.where is a select, so
        # any NaN/Inf in the unselected garbage lanes cannot propagate.
        tile_idx = c * tiles_per_split + i
        row_ids = tile_idx * tile_rows + jax.lax.broadcasted_iota(
            jnp.int32, dd.shape, 0)
        dd = jnp.where(row_ids < rows_total, dd, 0.0)

    # Per-lane partial sums into a resident VMEM vector accumulator.
    acc_ref[...] += jnp.sum(dd, axis=0, keepdims=True)

    @pl.when(i == pl.num_programs(1) - 1)
    def _finalize():
        # Single cross-lane reduce per split.
        o_ref[0, 0] = jnp.sum(acc_ref[...])


def stable_mse_loss(inp, tgt, eps=1e-6):
    """Returns a scalar float32: mean((inp - tgt)**2 + eps)."""
    assert inp.shape == tgt.shape
    n_elems = inp.size

    x = inp.reshape(-1)
    t = tgt.reshape(-1)

    # Lane-level padding only (<= 127 zeros).  Zero padding contributes 0 to
    # sum(d^2); the mean uses the original element count, so the result is
    # unchanged.  No full-tile padding of the arrays is ever materialized.
    rem = n_elems % LANES
    if rem:
        x = jnp.pad(x, (0, LANES - rem))
        t = jnp.pad(t, (0, LANES - rem))

    rows = x.size // LANES
    x2d = x.reshape(rows, LANES)
    t2d = t.reshape(rows, LANES)

    # Tile rows: full array if it fits in one block, else MAX_TILE_ROWS
    # (multiple of 8/16, so f32 and bf16 layouts are both legal).
    tile_rows = rows if rows <= MAX_TILE_ROWS else MAX_TILE_ROWS
    n_tiles = pl.cdiv(rows, tile_rows)
    ragged = (rows % tile_rows) != 0

    # 2-way split for v7x megacore when it divides evenly (keeps every block
    # index in-bounds); neutral on single-TensorCore chips.
    num_splits = 2 if (n_tiles >= 2 and n_tiles % 2 == 0) else 1
    tiles_per_split = n_tiles // num_splits

    kernel = functools.partial(
        _stable_mse_kernel,
        rows_total=rows,
        tile_rows=tile_rows,
        tiles_per_split=tiles_per_split,
        ragged=ragged,
    )

    in_spec = pl.BlockSpec(
        (tile_rows, LANES),
        lambda c, i: (c * tiles_per_split + i, 0),
    )

    partials = pl.pallas_call(
        kernel,
        out_shape=jax.ShapeDtypeStruct((num_splits, 1), jnp.float32),
        grid_spec=pltpu.PrefetchScalarGridSpec(
            num_scalar_prefetch=0,
            grid=(num_splits, tiles_per_split),
            in_specs=[in_spec, in_spec],
            out_specs=pl.BlockSpec(
                (1, 1), lambda c, i: (c, 0), memory_space=pltpu.SMEM),
            scratch_shapes=[pltpu.VMEM((1, LANES), jnp.float32)],
        ),
        compiler_params=pltpu.CompilerParams(
            dimension_semantics=("parallel", "arbitrary")),
    )(x2d, t2d)

    n = jnp.float32(n_elems)
    return (jnp.sum(partials) + jnp.float32(eps) * n) / n


if __name__ == "__main__":
    key = jax.random.PRNGKey(0)
    k1, k2 = jax.random.split(key)

    # Shapes consistent with an NCHW tensor pair fed to the loss.
    inp = jax.random.normal(k1, (2, 4, 16, 16), dtype=jnp.float32)
    tgt = jax.random.normal(k2, (2, 4, 16, 16), dtype=jnp.float32)

    loss = stable_mse_loss(inp, tgt, eps=1e-6)
    jax.block_until_ready(loss)
    ref = jnp.mean((inp - tgt) ** 2 + 1e-6)
    assert jnp.allclose(loss, ref, rtol=1e-5, atol=1e-6), (loss, ref)

    # Second check exercising the optimized paths: multi-tile grid, ragged
    # last block (row mask) and the 2-way split.
    k3, k4 = jax.random.split(k2)
    inp2 = jax.random.normal(k3, (4, 8, 100, 100), dtype=jnp.float32)
    tgt2 = jax.random.normal(k4, (4, 8, 100, 100), dtype=jnp.float32)
    loss2 = stable_mse_loss(inp2, tgt2, eps=1e-6)
    jax.block_until_ready(loss2)
    ref2 = jnp.mean((inp2 - tgt2) ** 2 + 1e-6)
    assert jnp.allclose(loss2, ref2, rtol=1e-5, atol=1e-6), (loss2, ref2)

    print("KERNEL_OK")
</pallas_src>

<mosaic_0001>
module attributes {stable_mosaic.version = 11 : i64} {
  func.func @_stable_mse_kernel(%arg0: i32, %arg1: i32, %arg2: memref<16x128xf32, #tpu.memory_space<vmem>>, %arg3: memref<16x128xf32, #tpu.memory_space<vmem>>, %arg4: memref<1x1xf32, #tpu.memory_space<smem>>, %arg5: memref<1x128xf32, #tpu.memory_space<vmem>>) attributes {dimension_semantics = [#tpu.dimension_semantics<parallel>, #tpu.dimension_semantics<arbitrary>], iteration_bounds = array<i64: 1, 1>, scalar_prefetch = 0 : i64, scratch_operands = 1 : i64, tpu.core_type = #tpu.core_type<tc>, window_params = [{transform_indices = @transform_0, window_bounds = array<i64: 16, 128>}, {transform_indices = @transform_1, window_bounds = array<i64: 16, 128>}, {transform_indices = @transform_2, window_bounds = array<i64: 1, 1>}]} {
    %c0_i32 = arith.constant 0 : i32
    %0 = arith.cmpi eq, %arg1, %c0_i32 : i32
    %1 = arith.extui %0 : i1 to i32
    %c0_i32_0 = arith.constant 0 : i32
    %2 = arith.cmpi ne, %1, %c0_i32_0 : i32
    scf.if %2 {
      %cst_10 = arith.constant 0.000000e+00 : f32
      %15 = vector.broadcast %cst_10 : f32 to vector<1x128xf32>
      %c0_11 = arith.constant 0 : index
      %c0_12 = arith.constant 0 : index
      %16 = vector.load %arg5[%c0_11, %c0_12] : memref<1x128xf32, #tpu.memory_space<vmem>>, vector<1x128xf32>
      tpu.vector_store %arg5[%c0_11, %c0_12], %15 {strides = array<i32>} : memref<1x128xf32, #tpu.memory_space<vmem>>, vector<1x128xf32>,
    } else {
    }
    %c0 = arith.constant 0 : index
    %c0_1 = arith.constant 0 : index
    %3 = vector.load %arg2[%c0, %c0_1] : memref<16x128xf32, #tpu.memory_space<vmem>>, vector<16x128xf32>
    %c0_2 = arith.constant 0 : index
    %c0_3 = arith.constant 0 : index
    %4 = vector.load %arg3[%c0_2, %c0_3] : memref<16x128xf32, #tpu.memory_space<vmem>>, vector<16x128xf32>
    %5 = arith.subf %3, %4 : vector<16x128xf32>
    %6 = arith.mulf %5, %5 : vector<16x128xf32>
    %c0_4 = arith.constant 0 : index
    %c0_5 = arith.constant 0 : index
    %7 = vector.load %arg5[%c0_4, %c0_5] : memref<1x128xf32, #tpu.memory_space<vmem>>, vector<1x128xf32>
    %cst = arith.constant dense<0.000000e+00> : vector<128xf32>
    %8 = vector.multi_reduction <add>, %6, %cst [0] : vector<16x128xf32> to vector<128xf32>
    %9 = vector.shape_cast %8 : vector<128xf32> to vector<1x128xf32>
    %10 = arith.addf %7, %9 : vector<1x128xf32>
    %c0_6 = arith.constant 0 : index
    %c0_7 = arith.constant 0 : index
    %11 = vector.load %arg5[%c0_6, %c0_7] : memref<1x128xf32, #tpu.memory_space<vmem>>, vector<1x128xf32>
    tpu.vector_store %arg5[%c0_6, %c0_7], %10 {strides = array<i32>} : memref<1x128xf32, #tpu.memory_space<vmem>>, vector<1x128xf32>,
    %c0_i32_8 = arith.constant 0 : i32
    %12 = arith.cmpi eq, %arg1, %c0_i32_8 : i32
    %13 = arith.extui %12 : i1 to i32
    %c0_i32_9 = arith.constant 0 : i32
    %14 = arith.cmpi ne, %13, %c0_i32_9 : i32
    scf.if %14 {
      %c0_10 = arith.constant 0 : index
      %c0_11 = arith.constant 0 : index
      %15 = vector.load %arg5[%c0_10, %c0_11] : memref<1x128xf32, #tpu.memory_space<vmem>>, vector<1x128xf32>
      %16 = vector.shape_cast %15 : vector<1x128xf32> to vector<1x1x128xf32>
      %cst_12 = arith.constant dense<0.000000e+00> : vector<1xf32>
      %17 = vector.multi_reduction <add>, %16, %cst_12 [1, 2] : vector<1x1x128xf32> to vector<1xf32>
      %18 = vector.shape_cast %17 : vector<1xf32> to vector<1x1x1xf32>
      %19 = vector.extract %18[0, 0, 0] : f32 from vector<1x1x1xf32>
      %c0_13 = arith.constant 0 : index
      %c0_14 = arith.constant 0 : index
      %20 = memref.load %arg4[%c0_13, %c0_14] : memref<1x1xf32, #tpu.memory_space<smem>>
      memref.store %19, %arg4[%c0_13, %c0_14] : memref<1x1xf32, #tpu.memory_space<smem>>
    } else {
    }
    return
  }
  func.func @transform_0(%arg0: i32, %arg1: i32) -> (i32, i32) {
    %c1_i32 = arith.constant 1 : i32
    %0 = arith.muli %arg0, %c1_i32 : i32
    %1 = arith.addi %0, %arg1 : i32
    %c0_i32 = arith.constant 0 : i32
    %c0_i32_0 = arith.constant 0 : i32
    return %1, %c0_i32 : i32, i32
  }
  func.func @transform_1(%arg0: i32, %arg1: i32) -> (i32, i32) {
    %c1_i32 = arith.constant 1 : i32
    %0 = arith.muli %arg0, %c1_i32 : i32
    %1 = arith.addi %0, %arg1 : i32
    %c0_i32 = arith.constant 0 : i32
    %c0_i32_0 = arith.constant 0 : i32
    return %1, %c0_i32 : i32, i32
  }
  func.func @transform_2(%arg0: i32, %arg1: i32) -> (i32, i32) {
    %c0_i32 = arith.constant 0 : i32
    %c0_i32_0 = arith.constant 0 : i32
    return %arg0, %c0_i32 : i32, i32
  }
}

</mosaic_0001>

<llo_original>
// kernel: tpu_custom_call.1
$region0: #{tpu_custom_call.1}
  #allocation0 [shape = 'u32[]', space=smem, size = 0x4, offset = 0x4, fixed_abs, tag = 'smem constant byte address 0x4 - core index']
  #allocation1 [shape = 'u32[144,128]{1,0:T(1,128)}', space=vmem, size = 0x12000, scoped, tag = 'internal scratch']
  #allocation2 [shape = 'f32[1,128]{1,0:T(1,128)}', space=vmem, size = 0x200, scoped, tag = 'scratch operand']
  %s0 = inlined_call_operand.hbm [shape: f32[16,128], index: 0, kind: input, shape index: {}]
  %s1 = inlined_call_operand.hbm [shape: f32[16,128], index: 1, kind: input, shape index: {}]
  %s2 = inlined_call_operand.hbm [shape: f32[1,1], index: 2, kind: output, shape index: {}]
  %s3 = sld [smem:[#allocation0]]
  $region34: #{tpu_custom_call.1} parent=0
    _
  %s5 = ssub.s32 1, %s3
  %s6 = scalar_select 0, %s5, %s3
  $region1: #{tpu_custom_call.1} parent=0
    #allocation3 [shape = 'u8[8192]{0}', space=vmem, size = 0x2000, scoped, tag = 'input window, operand 0, single buffered']
    #allocation4 [shape = 's32[1]{0}', space=sflag, size = 0x4, scoped, tag = 'scoped memory for tpu_custom_call.1']
    #allocation5 [shape = 's32[1]{0}', space=sflag, size = 0x4, scoped, tag = 'scoped memory for tpu_custom_call.1']
    #allocation6 [shape = 'u8[8192]{0}', space=vmem, size = 0x2000, scoped, tag = 'input window, operand 1, single buffered']
    #allocation7 [shape = 's32[1]{0}', space=sflag, size = 0x4, scoped, tag = 'scoped memory for tpu_custom_call.1']
    #allocation8 [shape = 'u8[512]{0}', space=smem, size = 0x200, scoped, tag = 'output window, operand 0, single buffered']
    %7 = vsyncpa [#allocation4], 0
    %8 = vsyncpa [#allocation7], 0
    %9 = vsyncpa [#allocation5], 0
    // Predicated region
    $region2: #{tpu_custom_call.1} parent=1 // pred_check
      _
    $region3: #{tpu_custom_call.1} parent=1 // pred_check_branch
      %11 = sbr.rel (0) target = $region5
    $region4: #{tpu_custom_call.1} parent=1 // pred_region
      %s12 = sadd.s32 0, 0
      %s13 = smul.u32 2, %s12
      %s15 = ssub.s32 256, 256
      %16 = vsyncadd [#allocation4], %s15
      %s17 = smul.addr %s13, 128
      %s18 = scalar_lea.hbm %s0, %s17
      %s19 = sshll.u32 [#allocation3], 4
      %s20 = int_to_ptr.vmem [resolvable:$true] %s19
      %25 = dma.hbm_to_vmem [thread:$0]  %s18, 256, %s20, [#allocation4], 128, 128, 8
    $region5: #{tpu_custom_call.1} parent=1 // pred_fallthru
      _
    // Predicated region
    $region6: #{tpu_custom_call.1} parent=1 // pred_check
      _
    $region7: #{tpu_custom_call.1} parent=1 // pred_check_branch
      %27 = sbr.rel (0) target = $region9
    $region8: #{tpu_custom_call.1} parent=1 // pred_region
      %s28 = sadd.s32 0, 0
      %s29 = smul.u32 2, %s28
      %s31 = ssub.s32 256, 256
      %32 = vsyncadd [#allocation7], %s31
      %s33 = smul.addr %s29, 128
      %s34 = scalar_lea.hbm %s1, %s33
      %s35 = sshll.u32 [#allocation6], 4
      %s36 = int_to_ptr.vmem [resolvable:$true] %s35
      %41 = dma.hbm_to_vmem [thread:$0]  %s34, 256, %s36, [#allocation7], 128, 128, 8
    $region9: #{tpu_custom_call.1} parent=1 // pred_fallthru
      _
    // Predicated region
    $region10: #{tpu_custom_call.1} parent=1 // pred_check
      _
    $region11: #{tpu_custom_call.1} parent=1 // pred_check_branch
      %43 = sbr.rel (0) target = $region13
    $region12: #{tpu_custom_call.1} parent=1 // pred_region
      %44 = dma.done [#allocation4], 256
    $region13: #{tpu_custom_call.1} parent=1 // pred_fallthru
      _
    // Predicated region
    $region14: #{tpu_custom_call.1} parent=1 // pred_check
      _
    $region15: #{tpu_custom_call.1} parent=1 // pred_check_branch
      %46 = sbr.rel (0) target = $region17
    $region16: #{tpu_custom_call.1} parent=1 // pred_region
      %47 = dma.done [#allocation7], 256
    $region17: #{tpu_custom_call.1} parent=1 // pred_fallthru
      _
    %s48 = sadd.s32 0, 0
    %s49 = smul.u32 2, %s48
    %s50 = sadd.s32 0, 0
    %s51 = smul.u32 2, %s50
    %p52 = scmp.eq.s32.totalorder 0, 0
    // Predicated region
    $region18: #{tpu_custom_call.1} parent=1 // pred_check
      %p53 = pneg %p52
    $region19: #{tpu_custom_call.1} parent=1 // pred_check_branch
      %55 = sbr.rel (%p53) target = $region21
    $region20: #{tpu_custom_call.1} parent=1 // pred_region
      %56 = vst [vmem:[#allocation2] sm:$0x1] 0.0
    $region21: #{tpu_custom_call.1} parent=1 // pred_fallthru
      _
    %v57 = vld [vmem:[#allocation3] sm:$0xff]
    %v58 = vld [vmem:[#allocation3 + $0x8] sm:$0xff]
    %v59 = vld [vmem:[#allocation6] sm:$0xff]
    %v60 = vld [vmem:[#allocation6 + $0x8] sm:$0xff]
    %v61 = vsub.f32 %v57, %v59
    %v62 = vsub.f32 %v58, %v60
    %v63 = vmul.f32 %v61, %v61
    %v64 = vmul.f32 %v62, %v62
    %v65 = vld [vmem:[#allocation2] sm:$0x1]
    %v66 = vadd.f32 %v63, %v64
    %v67 = vrot.slane %v66, 4
    %v68 = vadd.f32 %v66, %v67
    %v69 = vrot.slane %v68, 2
    %v70 = vadd.f32 %v68, %v69
    %v71 = vrot.slane %v70, 1
    %v72 = vadd.f32 %v70, %v71
    %v73 = vadd.f32 %v65, %v72
    %74 = vst [vmem:[#allocation2] sm:$0x1] %v73
    // Predicated region
    $region22: #{tpu_custom_call.1} parent=1 // pred_check
      %p75 = pneg %p52
    $region23: #{tpu_custom_call.1} parent=1 // pred_check_branch
      %77 = sbr.rel (%p75) target = $region25
    $region24: #{tpu_custom_call.1} parent=1 // pred_region
      %v78 = vld [vmem:[#allocation2] sm:$0x1]
      %vm79 = vcmask 1040384
      %v80 = vsel %vm79, %v78, 0.0
      %81 = vadd.xlane.f32.xlu0 %v80
      %v82 = vpop.xlane.xlu0 %81
      %v83 = vrot.slane %v82, 4
      %v84 = vadd.f32 %v82, %v83
      %v85 = vrot.slane %v84, 2
      %v86 = vadd.f32 %v84, %v85
      %v87 = vrot.slane %v86, 1
      %v88 = vadd.f32 %v86, %v87
      %s89 = vtos %v88
      %s90 = scalar_lea.smem [#allocation8], 0
      %91 = sst [smem:[%s90]] %s89
    $region25: #{tpu_custom_call.1} parent=1 // pred_fallthru
      _
    // Predicated region
    $region26: #{tpu_custom_call.1} parent=1 // pred_check
      _
    $region27: #{tpu_custom_call.1} parent=1 // pred_check_branch
      %93 = sbr.rel (0) target = $region29
    $region28: #{tpu_custom_call.1} parent=1 // pred_region
      %s95 = ssub.s32 16, 16
      %96 = vsyncadd [#allocation5], %s95
      %99 = dma.smem_to_hbm [#allocation8], 16, %s2, [#allocation5]
    $region29: #{tpu_custom_call.1} parent=1 // pred_fallthru
      _
    // Predicated region
    $region30: #{tpu_custom_call.1} parent=1 // pred_check
      _
    $region31: #{tpu_custom_call.1} parent=1 // pred_check_branch
      %101 = sbr.rel (0) target = $region33
    $region32: #{tpu_custom_call.1} parent=1 // pred_region
      %102 = dma.done [#allocation5], 16
    $region33: #{tpu_custom_call.1} parent=1 // pred_fallthru
      _
    %103 = sfence
    %104 = vsyncpa [#allocation4], 1
    %105 = vsyncpa [#allocation7], 1
    %106 = vsyncpa [#allocation5], 1

</llo_original>
